<compile_context>
chip_gen: v6e
topology: v6e:2x2x1
jax: 0.10.0
libtpu: 0.0.40
codegen_flags: <defaults>
</compile_context>

<pallas_src>
import jax
import jax.numpy as jnp
from jax.experimental import pallas as pl
from jax.experimental.pallas import tpu as pltpu

KERNEL_HEIGHTS = (3, 4, 5)


def _make_kernel(kernel_heights, C):
    # Lane offsets of each conv's tap block inside the fused matmul output.
    offsets = []
    off = 0
    for kh in kernel_heights:
        offsets.append(off)
        off += kh * C

    def kernel(x_ref, wcat_ref, b1_ref, b2_ref, b3_ref,
               wfc1_ref, wfc2_ref, wfc3_ref, bfc_ref, out_ref):
        Bt, S, D = x_ref.shape

        # One fused MXU matmul for all conv taps:
        #   (Bt*S, D) @ (D, sum(kh)*C) -> f32 (Bt*S, sum(kh)*C)
        x2 = x_ref[...].reshape(Bt * S, D)
        z = jnp.dot(x2, wcat_ref[...], preferred_element_type=jnp.float32)
        z3 = z.reshape(Bt, S, -1)

        def conv_pool(off, kh, b_ref):
            T = S - kh + 1                                   # valid conv length
            # Shift-add the kh tap contributions (cheap VPU work).
            acc = z3[:, 0:T, off:off + C]
            for r in range(1, kh):
                acc = acc + z3[:, r:r + T, off + r * C: off + (r + 1) * C]
            m = jnp.max(acc, axis=1)                         # max_pool1d over time -> (Bt, C)
            # bias is constant over time and ReLU is monotone, so add + clamp
            # after the pool (identical result, (1,C) instead of (T,C) ops).
            return jnp.maximum(m + b_ref[...], 0.0)

        m1 = conv_pool(offsets[0], kernel_heights[0], b1_ref)
        m2 = conv_pool(offsets[1], kernel_heights[1], b2_ref)
        m3 = conv_pool(offsets[2], kernel_heights[2], b3_ref)

        # TODO(synk): nn.Dropout is identity in eval/inference; training-mode
        # stochastic dropout (masking + scaling) is not implemented here.
        # FC split into three (C, C) blocks avoids a lane-axis concatenate.
        fc = jnp.dot(m1, wfc1_ref[...], preferred_element_type=jnp.float32)
        fc = fc + jnp.dot(m2, wfc2_ref[...], preferred_element_type=jnp.float32)
        fc = fc + jnp.dot(m3, wfc3_ref[...], preferred_element_type=jnp.float32)
        fc = fc + bfc_ref[...]
        out_ref[...] = jnp.maximum(fc, 0.0).astype(out_ref.dtype)   # Linear + ReLU

    return kernel


def cnn_fusion_block(x, params, kernel_heights=KERNEL_HEIGHTS, block_b=32):
    B, S, D = x.shape
    C = params['bfc'].shape[-1]
    n_conv = len(kernel_heights)

    # ---- wrapper-side repacking (outside the kernel, not re-done per step) ----
    # W_cat: (D, sum(kh)*C), ordered conv1 taps, conv2 taps, conv3 taps so that
    # W_cat[:, off_i + r*C : off_i + (r+1)*C] == w_i[r].
    wcat = jnp.concatenate(
        [jnp.transpose(params[f'w{i}'], (1, 0, 2)).reshape(D, -1)
         for i in range(1, n_conv + 1)], axis=1)
    b1 = params['b1'].astype(jnp.float32)
    b2 = params['b2'].astype(jnp.float32)
    b3 = params['b3'].astype(jnp.float32)
    wfc = params['wfc']                                   # (3C, C)
    wfc1, wfc2, wfc3 = wfc[0:C], wfc[C:2 * C], wfc[2 * C:3 * C]
    bfc = params['bfc'].astype(jnp.float32)

    # Batch tile: whole batch when small, else 32 (multiple of 8 sublanes).
    Bt = B if B <= block_b else block_b
    grid = (pl.cdiv(B, Bt),)

    def full_spec(arr):
        nd = arr.ndim
        return pl.BlockSpec(arr.shape, lambda b, _nd=nd: (0,) * _nd)

    out = pl.pallas_call(
        _make_kernel(kernel_heights, C),
        out_shape=jax.ShapeDtypeStruct((B, C), x.dtype),
        grid=grid,
        in_specs=[
            pl.BlockSpec((Bt, S, D), lambda b: (b, 0, 0)),   # Bt batch rows per step
            full_spec(wcat),                                 # weights stay VMEM-resident
            full_spec(b1), full_spec(b2), full_spec(b3),
            full_spec(wfc1), full_spec(wfc2), full_spec(wfc3),
            full_spec(bfc),
        ],
        out_specs=pl.BlockSpec((Bt, C), lambda b: (b, 0)),   # dense (Bt, C) stores
        compiler_params=pltpu.CompilerParams(
            dimension_semantics=("parallel",)),
    )(x, wcat, b1, b2, b3, wfc1, wfc2, wfc3, bfc)
    return out


def init_params(key, input_dim, in_channels=1, out_channels=64,
                kernel_heights=KERNEL_HEIGHTS):
    """Deterministic init mirroring PyTorch parameter shapes."""
    keys = jax.random.split(key, 2 * len(kernel_heights) + 2)
    C = out_channels
    params = {}
    for i, kh in enumerate(kernel_heights, start=1):
        # PyTorch Conv2d weight: (C, in_channels, kh, input_dim), bias: (C,)
        fan_in = in_channels * kh * input_dim
        bound = 1.0 / jnp.sqrt(fan_in)
        w_pt = jax.random.uniform(keys[2 * (i - 1)],
                                  (C, in_channels, kh, input_dim),
                                  jnp.float32, -bound, bound)
        b = jax.random.uniform(keys[2 * (i - 1) + 1], (C,),
                               jnp.float32, -bound, bound)
        # kernel layout: (kh, D, C)
        params[f'w{i}'] = jnp.transpose(w_pt[:, 0, :, :], (1, 2, 0))
        params[f'b{i}'] = b.reshape(1, C)
    # PyTorch Linear(3C -> C): weight (C, 3C), bias (C,)
    fan_in = len(kernel_heights) * C
    bound = 1.0 / jnp.sqrt(fan_in)
    w_pt = jax.random.uniform(keys[-2], (C, fan_in), jnp.float32, -bound, bound)
    b = jax.random.uniform(keys[-1], (C,), jnp.float32, -bound, bound)
    params['wfc'] = w_pt.T            # (3C, C)
    params['bfc'] = b.reshape(1, C)
    return params


def reference(x, params, kernel_heights=KERNEL_HEIGHTS):
    """Pure-JAX reference with identical semantics (for verification)."""
    B, S, D = x.shape
    outs = []
    for i, kh in enumerate(kernel_heights, start=1):
        w = params[f'w{i}']           # (kh, D, C)
        b = params[f'b{i}']           # (1, C)
        T = S - kh + 1
        acc = sum(jnp.einsum('btd,dc->btc', x[:, r:r + T, :], w[r])
                  for r in range(kh))
        acc = acc + b[None, :, :]
        outs.append(jnp.max(jnp.maximum(acc, 0.0), axis=1))    # (B, C)
    all_out = jnp.concatenate(outs, axis=1)                    # (B, 3C)
    fc = all_out @ params['wfc'] + params['bfc']
    return jnp.maximum(fc, 0.0)


if __name__ == "__main__":
    key = jax.random.PRNGKey(0)
    kx, kp = jax.random.split(key)

    B, S, D, C = 2, 16, 32, 64   # batch, seq_len, feat_dim (input_dim), out_channels
    x = jax.random.normal(kx, (B, S, D), dtype=jnp.float32)
    params = init_params(kp, input_dim=D, out_channels=C)

    out = cnn_fusion_block(x, params)
    out = jax.block_until_ready(out)

    ref = reference(x, params)
    assert out.shape == (B, C), out.shape
    assert jnp.allclose(out, ref, atol=1e-4, rtol=1e-4), \
        float(jnp.max(jnp.abs(out - ref)))

    print("KERNEL_OK")
</pallas_src>

<mosaic_0001>
module attributes {stable_mosaic.version = 11 : i64} {
  func.func @kernel(%arg0: i32, %arg1: memref<2x16x32xf32, #tpu.memory_space<vmem>>, %arg2: memref<32x768xf32, #tpu.memory_space<vmem>>, %arg3: memref<1x64xf32, #tpu.memory_space<vmem>>, %arg4: memref<1x64xf32, #tpu.memory_space<vmem>>, %arg5: memref<1x64xf32, #tpu.memory_space<vmem>>, %arg6: memref<64x64xf32, #tpu.memory_space<vmem>>, %arg7: memref<64x64xf32, #tpu.memory_space<vmem>>, %arg8: memref<64x64xf32, #tpu.memory_space<vmem>>, %arg9: memref<1x64xf32, #tpu.memory_space<vmem>>, %arg10: memref<2x64xf32, #tpu.memory_space<vmem>>) attributes {dimension_semantics = [#tpu.dimension_semantics<parallel>], iteration_bounds = array<i64: 1>, scalar_prefetch = 0 : i64, scratch_operands = 0 : i64, tpu.core_type = #tpu.core_type<tc>, window_params = [{transform_indices = @transform_0, window_bounds = array<i64: 2, 16, 32>}, {pipeline_mode = #tpu.pipeline_mode<synchronous>, transform_indices = @transform_1, window_bounds = array<i64: 32, 768>}, {pipeline_mode = #tpu.pipeline_mode<synchronous>, transform_indices = @transform_2, window_bounds = array<i64: 1, 64>}, {pipeline_mode = #tpu.pipeline_mode<synchronous>, transform_indices = @transform_3, window_bounds = array<i64: 1, 64>}, {pipeline_mode = #tpu.pipeline_mode<synchronous>, transform_indices = @transform_4, window_bounds = array<i64: 1, 64>}, {pipeline_mode = #tpu.pipeline_mode<synchronous>, transform_indices = @transform_5, window_bounds = array<i64: 64, 64>}, {pipeline_mode = #tpu.pipeline_mode<synchronous>, transform_indices = @transform_6, window_bounds = array<i64: 64, 64>}, {pipeline_mode = #tpu.pipeline_mode<synchronous>, transform_indices = @transform_7, window_bounds = array<i64: 64, 64>}, {pipeline_mode = #tpu.pipeline_mode<synchronous>, transform_indices = @transform_8, window_bounds = array<i64: 1, 64>}, {transform_indices = @transform_9, window_bounds = array<i64: 2, 64>}]} {
    %c0 = arith.constant 0 : index
    %c0_0 = arith.constant 0 : index
    %c0_1 = arith.constant 0 : index
    %0 = vector.load %arg1[%c0, %c0_0, %c0_1] : memref<2x16x32xf32, #tpu.memory_space<vmem>>, vector<2x16x32xf32>
    %1 = vector.shape_cast %0 : vector<2x16x32xf32> to vector<32x32xf32>
    %c0_2 = arith.constant 0 : index
    %c0_3 = arith.constant 0 : index
    %2 = vector.load %arg2[%c0_2, %c0_3] : memref<32x768xf32, #tpu.memory_space<vmem>>, vector<32x768xf32>
    %cst = arith.constant dense<0.000000e+00> : vector<32x768xf32>
    %3 = tpu.matmul %1, %2, %cst {dimension_numbers = #tpu.dot_dimension_numbers<[1], [0], [0], [1], [0, 0, 1, 1], [], []>} : vector<32x32xf32>, vector<32x768xf32>, vector<32x768xf32> -> vector<32x768xf32>
    %4 = vector.shape_cast %3 : vector<32x768xf32> to vector<2x16x768xf32>
    %5 = vector.extract_strided_slice %4 {offsets = [0, 0, 0], sizes = [2, 14, 64], strides = [1, 1, 1]} : vector<2x16x768xf32> to vector<2x14x64xf32>
    %6 = vector.extract_strided_slice %4 {offsets = [0, 1, 64], sizes = [2, 14, 64], strides = [1, 1, 1]} : vector<2x16x768xf32> to vector<2x14x64xf32>
    %7 = arith.addf %5, %6 : vector<2x14x64xf32>
    %8 = vector.extract_strided_slice %4 {offsets = [0, 2, 128], sizes = [2, 14, 64], strides = [1, 1, 1]} : vector<2x16x768xf32> to vector<2x14x64xf32>
    %9 = arith.addf %7, %8 : vector<2x14x64xf32>
    %cst_4 = arith.constant dense<0xFF800000> : vector<2x64xf32>
    %10 = vector.multi_reduction <maximumf>, %9, %cst_4 [1] : vector<2x14x64xf32> to vector<2x64xf32>
    %c0_5 = arith.constant 0 : index
    %c0_6 = arith.constant 0 : index
    %11 = vector.load %arg3[%c0_5, %c0_6] : memref<1x64xf32, #tpu.memory_space<vmem>>, vector<1x64xf32>
    %12 = vector.broadcast %11 : vector<1x64xf32> to vector<2x64xf32>
    %13 = arith.addf %10, %12 : vector<2x64xf32>
    %cst_7 = arith.constant 0.000000e+00 : f32
    %14 = vector.broadcast %cst_7 : f32 to vector<2x64xf32>
    %15 = arith.maximumf %13, %14 : vector<2x64xf32>
    %16 = vector.extract_strided_slice %4 {offsets = [0, 0, 192], sizes = [2, 13, 64], strides = [1, 1, 1]} : vector<2x16x768xf32> to vector<2x13x64xf32>
    %17 = vector.extract_strided_slice %4 {offsets = [0, 1, 256], sizes = [2, 13, 64], strides = [1, 1, 1]} : vector<2x16x768xf32> to vector<2x13x64xf32>
    %18 = arith.addf %16, %17 : vector<2x13x64xf32>
    %19 = vector.extract_strided_slice %4 {offsets = [0, 2, 320], sizes = [2, 13, 64], strides = [1, 1, 1]} : vector<2x16x768xf32> to vector<2x13x64xf32>
    %20 = arith.addf %18, %19 : vector<2x13x64xf32>
    %21 = vector.extract_strided_slice %4 {offsets = [0, 3, 384], sizes = [2, 13, 64], strides = [1, 1, 1]} : vector<2x16x768xf32> to vector<2x13x64xf32>
    %22 = arith.addf %20, %21 : vector<2x13x64xf32>
    %cst_8 = arith.constant dense<0xFF800000> : vector<2x64xf32>
    %23 = vector.multi_reduction <maximumf>, %22, %cst_8 [1] : vector<2x13x64xf32> to vector<2x64xf32>
    %c0_9 = arith.constant 0 : index
    %c0_10 = arith.constant 0 : index
    %24 = vector.load %arg4[%c0_9, %c0_10] : memref<1x64xf32, #tpu.memory_space<vmem>>, vector<1x64xf32>
    %25 = vector.broadcast %24 : vector<1x64xf32> to vector<2x64xf32>
    %26 = arith.addf %23, %25 : vector<2x64xf32>
    %cst_11 = arith.constant 0.000000e+00 : f32
    %27 = vector.broadcast %cst_11 : f32 to vector<2x64xf32>
    %28 = arith.maximumf %26, %27 : vector<2x64xf32>
    %29 = vector.extract_strided_slice %4 {offsets = [0, 0, 448], sizes = [2, 12, 64], strides = [1, 1, 1]} : vector<2x16x768xf32> to vector<2x12x64xf32>
    %30 = vector.extract_strided_slice %4 {offsets = [0, 1, 512], sizes = [2, 12, 64], strides = [1, 1, 1]} : vector<2x16x768xf32> to vector<2x12x64xf32>
    %31 = arith.addf %29, %30 : vector<2x12x64xf32>
    %32 = vector.extract_strided_slice %4 {offsets = [0, 2, 576], sizes = [2, 12, 64], strides = [1, 1, 1]} : vector<2x16x768xf32> to vector<2x12x64xf32>
    %33 = arith.addf %31, %32 : vector<2x12x64xf32>
    %34 = vector.extract_strided_slice %4 {offsets = [0, 3, 640], sizes = [2, 12, 64], strides = [1, 1, 1]} : vector<2x16x768xf32> to vector<2x12x64xf32>
    %35 = arith.addf %33, %34 : vector<2x12x64xf32>
    %36 = vector.extract_strided_slice %4 {offsets = [0, 4, 704], sizes = [2, 12, 64], strides = [1, 1, 1]} : vector<2x16x768xf32> to vector<2x12x64xf32>
    %37 = arith.addf %35, %36 : vector<2x12x64xf32>
    %cst_12 = arith.constant dense<0xFF800000> : vector<2x64xf32>
    %38 = vector.multi_reduction <maximumf>, %37, %cst_12 [1] : vector<2x12x64xf32> to vector<2x64xf32>
    %c0_13 = arith.constant 0 : index
    %c0_14 = arith.constant 0 : index
    %39 = vector.load %arg5[%c0_13, %c0_14] : memref<1x64xf32, #tpu.memory_space<vmem>>, vector<1x64xf32>
    %40 = vector.broadcast %39 : vector<1x64xf32> to vector<2x64xf32>
    %41 = arith.addf %38, %40 : vector<2x64xf32>
    %cst_15 = arith.constant 0.000000e+00 : f32
    %42 = vector.broadcast %cst_15 : f32 to vector<2x64xf32>
    %43 = arith.maximumf %41, %42 : vector<2x64xf32>
    %c0_16 = arith.constant 0 : index
    %c0_17 = arith.constant 0 : index
    %44 = vector.load %arg6[%c0_16, %c0_17] : memref<64x64xf32, #tpu.memory_space<vmem>>, vector<64x64xf32>
    %cst_18 = arith.constant dense<0.000000e+00> : vector<2x64xf32>
    %45 = tpu.matmul %15, %44, %cst_18 {dimension_numbers = #tpu.dot_dimension_numbers<[1], [0], [0], [1], [0, 0, 1, 1], [], []>} : vector<2x64xf32>, vector<64x64xf32>, vector<2x64xf32> -> vector<2x64xf32>
    %c0_19 = arith.constant 0 : index
    %c0_20 = arith.constant 0 : index
    %46 = vector.load %arg7[%c0_19, %c0_20] : memref<64x64xf32, #tpu.memory_space<vmem>>, vector<64x64xf32>
    %cst_21 = arith.constant dense<0.000000e+00> : vector<2x64xf32>
    %47 = tpu.matmul %28, %46, %cst_21 {dimension_numbers = #tpu.dot_dimension_numbers<[1], [0], [0], [1], [0, 0, 1, 1], [], []>} : vector<2x64xf32>, vector<64x64xf32>, vector<2x64xf32> -> vector<2x64xf32>
    %48 = arith.addf %45, %47 : vector<2x64xf32>
    %c0_22 = arith.constant 0 : index
    %c0_23 = arith.constant 0 : index
    %49 = vector.load %arg8[%c0_22, %c0_23] : memref<64x64xf32, #tpu.memory_space<vmem>>, vector<64x64xf32>
    %cst_24 = arith.constant dense<0.000000e+00> : vector<2x64xf32>
    %50 = tpu.matmul %43, %49, %cst_24 {dimension_numbers = #tpu.dot_dimension_numbers<[1], [0], [0], [1], [0, 0, 1, 1], [], []>} : vector<2x64xf32>, vector<64x64xf32>, vector<2x64xf32> -> vector<2x64xf32>
    %51 = arith.addf %48, %50 : vector<2x64xf32>
    %c0_25 = arith.constant 0 : index
    %c0_26 = arith.constant 0 : index
    %52 = vector.load %arg9[%c0_25, %c0_26] : memref<1x64xf32, #tpu.memory_space<vmem>>, vector<1x64xf32>
    %53 = vector.broadcast %52 : vector<1x64xf32> to vector<2x64xf32>
    %54 = arith.addf %51, %53 : vector<2x64xf32>
    %cst_27 = arith.constant 0.000000e+00 : f32
    %55 = vector.broadcast %cst_27 : f32 to vector<2x64xf32>
    %56 = arith.maximumf %54, %55 : vector<2x64xf32>
    %c0_28 = arith.constant 0 : index
    %c0_29 = arith.constant 0 : index
    %57 = vector.load %arg10[%c0_28, %c0_29] : memref<2x64xf32, #tpu.memory_space<vmem>>, vector<2x64xf32>
    tpu.vector_store %arg10[%c0_28, %c0_29], %56 {strides = array<i32>} : memref<2x64xf32, #tpu.memory_space<vmem>>, vector<2x64xf32>,
    return
  }
  func.func @transform_0(%arg0: i32) -> (i32, i32, i32) {
    %c0_i32 = arith.constant 0 : i32
    %c0_i32_0 = arith.constant 0 : i32
    %c0_i32_1 = arith.constant 0 : i32
    return %arg0, %c0_i32, %c0_i32_0 : i32, i32, i32
  }
  func.func @transform_1(%arg0: i32) -> (i32, i32) {
    %c0_i32 = arith.constant 0 : i32
    %c0_i32_0 = arith.constant 0 : i32
    %c0_i32_1 = arith.constant 0 : i32
    return %c0_i32, %c0_i32_0 : i32, i32
  }
  func.func @transform_2(%arg0: i32) -> (i32, i32) {
    %c0_i32 = arith.constant 0 : i32
    %c0_i32_0 = arith.constant 0 : i32
    %c0_i32_1 = arith.constant 0 : i32
    return %c0_i32, %c0_i32_0 : i32, i32
  }
  func.func @transform_3(%arg0: i32) -> (i32, i32) {
    %c0_i32 = arith.constant 0 : i32
    %c0_i32_0 = arith.constant 0 : i32
    %c0_i32_1 = arith.constant 0 : i32
    return %c0_i32, %c0_i32_0 : i32, i32
  }
  func.func @transform_4(%arg0: i32) -> (i32, i32) {
    %c0_i32 = arith.constant 0 : i32
    %c0_i32_0 = arith.constant 0 : i32
    %c0_i32_1 = arith.constant 0 : i32
    return %c0_i32, %c0_i32_0 : i32, i32
  }
  func.func @transform_5(%arg0: i32) -> (i32, i32) {
    %c0_i32 = arith.constant 0 : i32
    %c0_i32_0 = arith.constant 0 : i32
    %c0_i32_1 = arith.constant 0 : i32
    return %c0_i32, %c0_i32_0 : i32, i32
  }
  func.func @transform_6(%arg0: i32) -> (i32, i32) {
    %c0_i32 = arith.constant 0 : i32
    %c0_i32_0 = arith.constant 0 : i32
    %c0_i32_1 = arith.constant 0 : i32
    return %c0_i32, %c0_i32_0 : i32, i32
  }
  func.func @transform_7(%arg0: i32) -> (i32, i32) {
    %c0_i32 = arith.constant 0 : i32
    %c0_i32_0 = arith.constant 0 : i32
    %c0_i32_1 = arith.constant 0 : i32
    return %c0_i32, %c0_i32_0 : i32, i32
  }
  func.func @transform_8(%arg0: i32) -> (i32, i32) {
    %c0_i32 = arith.constant 0 : i32
    %c0_i32_0 = arith.constant 0 : i32
    %c0_i32_1 = arith.constant 0 : i32
    return %c0_i32, %c0_i32_0 : i32, i32
  }
  func.func @transform_9(%arg0: i32) -> (i32, i32) {
    %c0_i32 = arith.constant 0 : i32
    %c0_i32_0 = arith.constant 0 : i32
    return %arg0, %c0_i32 : i32, i32
  }
}

</mosaic_0001>

<llo_original>
// kernel: tpu_custom_call.1
$region0: #{tpu_custom_call.1}
  #allocation0 [shape = 'u32[]', space=smem, size = 0x4, offset = 0x4, fixed_abs, tag = 'smem constant byte address 0x4 - core index']
  #allocation1 [shape = 'u32[144,128]{1,0:T(1,128)}', space=vmem, size = 0x12000, scoped, tag = 'internal scratch']
  %s0 = inlined_call_operand.hbm [shape: f32[2,16,32], index: 0, kind: input, shape index: {}]
  %s1 = inlined_call_operand.hbm [shape: f32[32,768], index: 1, kind: input, shape index: {}]
  %s2 = inlined_call_operand.vmem [shape: f32[1,64], index: 2, kind: input, shape index: {}]
  %s3 = inlined_call_operand.vmem [shape: f32[1,64], index: 3, kind: input, shape index: {}]
  %s4 = inlined_call_operand.vmem [shape: f32[1,64], index: 4, kind: input, shape index: {}]
  %s5 = inlined_call_operand.hbm [shape: f32[64,64], index: 5, kind: input, shape index: {}]
  %s6 = inlined_call_operand.hbm [shape: f32[64,64], index: 6, kind: input, shape index: {}]
  %s7 = inlined_call_operand.hbm [shape: f32[64,64], index: 7, kind: input, shape index: {}]
  %s8 = inlined_call_operand.vmem [shape: f32[1,64], index: 8, kind: input, shape index: {}]
  %s9 = inlined_call_operand.hbm [shape: f32[2,64], index: 9, kind: output, shape index: {}]
  %s10 = sld [smem:[#allocation0]]
  $region66: #{tpu_custom_call.1} parent=0
    _
  %s12 = ssub.s32 1, %s10
  %s13 = scalar_select 0, %s12, %s10
  $region1: #{tpu_custom_call.1} parent=0
    #allocation2 [shape = 'u8[16384]{0}', space=vmem, size = 0x4000, scoped, tag = 'input window, operand 0, single buffered']
    #allocation3 [shape = 's32[1]{0}', space=sflag, size = 0x4, scoped, tag = 'scoped memory for tpu_custom_call.1']
    #allocation4 [shape = 's32[1]{0}', space=sflag, size = 0x4, scoped, tag = 'scoped memory for tpu_custom_call.1']
    #allocation5 [shape = 'u8[98304]{0}', space=vmem, size = 0x18000, scoped, tag = 'input window, operand 1, single buffered']
    #allocation6 [shape = 's32[1]{0}', space=sflag, size = 0x4, scoped, tag = 'scoped memory for tpu_custom_call.1']
    #allocation7 [shape = 'u8[32768]{0}', space=vmem, size = 0x8000, scoped, tag = 'input window, operand 5, single buffered']
    #allocation8 [shape = 'u8[32768]{0}', space=vmem, size = 0x8000, scoped, tag = 'input window, operand 6, single buffered']
    #allocation9 [shape = 's32[1]{0}', space=sflag, size = 0x4, scoped, tag = 'scoped memory for tpu_custom_call.1']
    #allocation10 [shape = 'u8[32768]{0}', space=vmem, size = 0x8000, scoped, tag = 'input window, operand 7, single buffered']
    #allocation11 [shape = 'u8[1024]{0}', space=vmem, size = 0x400, scoped, tag = 'output window, operand 0, single buffered']
    %14 = vsyncpa [#allocation3], 0
    %15 = vsyncpa [#allocation6], 0
    %16 = vsyncpa [#allocation9], 0
    %17 = vsyncpa [#allocation4], 0
    // Predicated region
    $region2: #{tpu_custom_call.1} parent=1 // pred_check
      _
    $region3: #{tpu_custom_call.1} parent=1 // pred_check_branch
      %19 = sbr.rel (0) target = $region5
    $region4: #{tpu_custom_call.1} parent=1 // pred_region
      %s21 = ssub.s32 512, 512
      %22 = vsyncadd [#allocation3], %s21
      %s23 = sshll.u32 [#allocation2], 4
      %s24 = int_to_ptr.vmem [resolvable:$true] %s23
      %29 = dma.hbm_to_vmem [thread:$0]  %s0, 512, %s24, [#allocation3], 128, 128, 8
    $region5: #{tpu_custom_call.1} parent=1 // pred_fallthru
      _
    // Predicated region
    $region6: #{tpu_custom_call.1} parent=1 // pred_check
      _
    $region7: #{tpu_custom_call.1} parent=1 // pred_check_branch
      %31 = sbr.rel (0) target = $region9
    $region8: #{tpu_custom_call.1} parent=1 // pred_region
      %s33 = ssub.s32 3072, 3072
      %34 = vsyncadd [#allocation6], %s33
      %s35 = sshll.u32 [#allocation5], 4
      %s36 = int_to_ptr.vmem [resolvable:$true] %s35
      %41 = dma.hbm_to_vmem [thread:$0]  %s1, 3072, %s36, [#allocation6], 768, 768, 48
    $region9: #{tpu_custom_call.1} parent=1 // pred_fallthru
      _
    // Predicated region
    $region10: #{tpu_custom_call.1} parent=1 // pred_check
      _
    $region11: #{tpu_custom_call.1} parent=1 // pred_check_branch
      %43 = sbr.rel (0) target = $region13
    $region12: #{tpu_custom_call.1} parent=1 // pred_region
      _
    $region13: #{tpu_custom_call.1} parent=1 // pred_fallthru
      _
    // Predicated region
    $region14: #{tpu_custom_call.1} parent=1 // pred_check
      _
    $region15: #{tpu_custom_call.1} parent=1 // pred_check_branch
      %45 = sbr.rel (0) target = $region17
    $region16: #{tpu_custom_call.1} parent=1 // pred_region
      _
    $region17: #{tpu_custom_call.1} parent=1 // pred_fallthru
      _
    // Predicated region
    $region18: #{tpu_custom_call.1} parent=1 // pred_check
      _
    $region19: #{tpu_custom_call.1} parent=1 // pred_check_branch
      %47 = sbr.rel (0) target = $region21
    $region20: #{tpu_custom_call.1} parent=1 // pred_region
      _
    $region21: #{tpu_custom_call.1} parent=1 // pred_fallthru
      _
    // Predicated region
    $region22: #{tpu_custom_call.1} parent=1 // pred_check
      _
    $region23: #{tpu_custom_call.1} parent=1 // pred_check_branch
      %49 = sbr.rel (0) target = $region25
    $region24: #{tpu_custom_call.1} parent=1 // pred_region
      %s51 = ssub.s32 1024, 1024
      %52 = vsyncadd [#allocation6], %s51
      %s53 = sshll.u32 [#allocation7], 4
      %s54 = int_to_ptr.vmem [resolvable:$true] %s53
      %59 = dma.hbm_to_vmem [thread:$0]  %s5, 1024, %s54, [#allocation6], 128, 128, 8
    $region25: #{tpu_custom_call.1} parent=1 // pred_fallthru
      _
    // Predicated region
    $region26: #{tpu_custom_call.1} parent=1 // pred_check
      _
    $region27: #{tpu_custom_call.1} parent=1 // pred_check_branch
      %61 = sbr.rel (0) target = $region29
    $region28: #{tpu_custom_call.1} parent=1 // pred_region
      %s63 = ssub.s32 1024, 1024
      %64 = vsyncadd [#allocation9], %s63
      %s65 = sshll.u32 [#allocation8], 4
      %s66 = int_to_ptr.vmem [resolvable:$true] %s65
      %71 = dma.hbm_to_vmem [thread:$0]  %s6, 1024, %s66, [#allocation9], 128, 128, 8
    $region29: #{tpu_custom_call.1} parent=1 // pred_fallthru
      _
    // Predicated region
    $region30: #{tpu_custom_call.1} parent=1 // pred_check
      _
    $region31: #{tpu_custom_call.1} parent=1 // pred_check_branch
      %73 = sbr.rel (0) target = $region33
    $region32: #{tpu_custom_call.1} parent=1 // pred_region
      %s75 = ssub.s32 1024, 1024
      %76 = vsyncadd [#allocation9], %s75
      %s77 = sshll.u32 [#allocation10], 4
      %s78 = int_to_ptr.vmem [resolvable:$true] %s77
      %83 = dma.hbm_to_vmem [thread:$0]  %s7, 1024, %s78, [#allocation9], 128, 128, 8
    $region33: #{tpu_custom_call.1} parent=1 // pred_fallthru
      _
    // Predicated region
    $region34: #{tpu_custom_call.1} parent=1 // pred_check
      _
    $region35: #{tpu_custom_call.1} parent=1 // pred_check_branch
      %85 = sbr.rel (0) target = $region37
    $region36: #{tpu_custom_call.1} parent=1 // pred_region
      _
    $region37: #{tpu_custom_call.1} parent=1 // pred_fallthru
      _
    // Predicated region
    $region38: #{tpu_custom_call.1} parent=1 // pred_check
      _
    $region39: #{tpu_custom_call.1} parent=1 // pred_check_branch
      %87 = sbr.rel (0) target = $region41
    $region40: #{tpu_custom_call.1} parent=1 // pred_region
      %88 = dma.done [#allocation3], 512
    $region41: #{tpu_custom_call.1} parent=1 // pred_fallthru
      _
    // Predicated region
    $region42: #{tpu_custom_call.1} parent=1 // pred_check
      _
    $region43: #{tpu_custom_call.1} parent=1 // pred_check_branch
      %90 = sbr.rel (0) target = $region45
    $region44: #{tpu_custom_call.1} parent=1 // pred_region
      %91 = dma.done [#allocation6], 3072
    $region45: #{tpu_custom_call.1} parent=1 // pred_fallthru
      _
    // Predicated region
    $region46: #{tpu_custom_call.1} parent=1 // pred_check
      _
    $region47: #{tpu_custom_call.1} parent=1 // pred_check_branch
      %93 = sbr.rel (0) target = $region49
    $region48: #{tpu_custom_call.1} parent=1 // pred_region
      %94 = dma.done [#allocation6], 1024
    $region49: #{tpu_custom_call.1} parent=1 // pred_fallthru
      _
    // Predicated region
    $region50: #{tpu_custom_call.1} parent=1 // pred_check
      _
    $region51: #{tpu_custom_call.1} parent=1 // pred_check_branch
      %96 = sbr.rel (0) target = $region53
    $region52: #{tpu_custom_call.1} parent=1 // pred_region
      %97 = dma.done [#allocation9], 1024
    $region53: #{tpu_custom_call.1} parent=1 // pred_fallthru
      _
    // Predicated region
    $region54: #{tpu_custom_call.1} parent=1 // pred_check
      _
    $region55: #{tpu_custom_call.1} parent=1 // pred_check_branch
      %99 = sbr.rel (0) target = $region57
    $region56: #{tpu_custom_call.1} parent=1 // pred_region
      %100 = dma.done [#allocation9], 1024
    $region57: #{tpu_custom_call.1} parent=1 // pred_fallthru
      _
    %v101 = vld [vmem:[#allocation2] sm:$0xff]
    %v102 = vld [vmem:[#allocation2 + $0x8] sm:$0xff]
    %v103 = vld [vmem:[#allocation2 + $0x10] sm:$0xff]
    %v104 = vld [vmem:[#allocation2 + $0x18] sm:$0xff]
    %v105 = vld [vmem:[#allocation5] sm:$0xff]
    %v106 = vld [vmem:[#allocation5 + $0x8] sm:$0xff]
    %v107 = vld [vmem:[#allocation5 + $0x10] sm:$0xff]
    %v108 = vld [vmem:[#allocation5 + $0x18] sm:$0xff]
    %v109 = vld [vmem:[#allocation5 + $0x20] sm:$0xff]
    %v110 = vld [vmem:[#allocation5 + $0x28] sm:$0xff]
    %v111 = vld [vmem:[#allocation5 + $0x30] sm:$0xff]
    %v112 = vld [vmem:[#allocation5 + $0x38] sm:$0xff]
    %v113 = vld [vmem:[#allocation5 + $0x40] sm:$0xff]
    %v114 = vld [vmem:[#allocation5 + $0x48] sm:$0xff]
    %v115 = vld [vmem:[#allocation5 + $0x50] sm:$0xff]
    %v116 = vld [vmem:[#allocation5 + $0x58] sm:$0xff]
    %v117 = vld [vmem:[#allocation5 + $0x60] sm:$0xff]
    %v118 = vld [vmem:[#allocation5 + $0x68] sm:$0xff]
    %v119 = vld [vmem:[#allocation5 + $0x70] sm:$0xff]
    %v120 = vld [vmem:[#allocation5 + $0x78] sm:$0xff]
    %v121 = vld [vmem:[#allocation5 + $0x80] sm:$0xff]
    %v122 = vld [vmem:[#allocation5 + $0x88] sm:$0xff]
    %v123 = vld [vmem:[#allocation5 + $0x90] sm:$0xff]
    %v124 = vld [vmem:[#allocation5 + $0x98] sm:$0xff]
    %v125 = vld [vmem:[#allocation5 + $0xa0] sm:$0xff]
    %v126 = vld [vmem:[#allocation5 + $0xa8] sm:$0xff]
    %v127 = vld [vmem:[#allocation5 + $0xb0] sm:$0xff]
    %v128 = vld [vmem:[#allocation5 + $0xb8] sm:$0xff]
    %vm129 = vcmask 261120
    %v131 = vsel %vm129, %v101, 0
    %v134 = vsel %vm129, %v102, 0
    %v137 = vsel %vm129, %v103, 0
    %v140 = vsel %vm129, %v104, 0
    %142 = vmatprep.subr.mxu0 0.0
    %143 = vmatpush1.msra.mxu0 0.0
    %144 = vmatprep.subr.mxu0 0.0
    %145 = vmatpush1.msra.mxu0 0.0
    %146 = vmatprep.subr.mxu0 0.0
    %147 = vmatpush1.msra.mxu0 0.0
    %148 = vmatprep.subr.mxu0 0.0
    %149 = vmatpush1.msra.mxu0 0.0
    %150 = vmatprep.subr.mxu0 0.0
    %151 = vmatpush1.msra.mxu0 0.0
    %152 = vmatprep.subr.mxu0 0.0
    %153 = vmatpush1.msra.mxu0 0.0
    %154 = vmatprep.subr.mxu0 0.0
    %155 = vmatpush1.msra.mxu0 0.0
    %156 = vmatprep.subr.mxu0 0.0
    %157 = vmatpush1.msra.mxu0 0.0
    %158 = vmatprep.subr.mxu0 0.0
    %159 = vmatpush1.msra.mxu0 0.0
    %160 = vmatprep.subr.mxu0 0.0
    %161 = vmatpush1.msra.mxu0 0.0
    %162 = vmatprep.subr.mxu0 0.0
    %163 = vmatpush1.msra.mxu0 0.0
    %164 = vmatprep.subr.mxu0 0.0
    %165 = vmatpush1.msra.mxu0 0.0
    %166 = vmatprep.subr.mxu0 %v124
    %167 = vmatpush1.msra.mxu0 %v123
    %168 = vmatprep.subr.mxu0 %v118
    %169 = vmatpush1.msra.mxu0 %v117
    %170 = vmatprep.subr.mxu0 %v112
    %171 = vmatpush1.msra.mxu0 %v111
    %172 = vmatprep.subr.mxu0 %v106
    %173 = vmatpush1.msra.mxu0 %v105
    %174 = vmatprep.subr.mxu0 0.0
    %175 = vmatpush2.msra.mxu0 0.0
    %176 = vmatprep.subr.mxu0 0.0
    %177 = vmatpush2.msra.mxu0 0.0
    %178 = vmatprep.subr.mxu0 0.0
    %179 = vmatpush2.msra.mxu0 0.0
    %180 = vmatprep.subr.mxu0 0.0
    %181 = vmatpush2.msra.mxu0 0.0
    %182 = vmatprep.subr.mxu0 0.0
    %183 = vmatpush2.msra.mxu0 0.0
    %184 = vmatprep.subr.mxu0 0.0
    %185 = vmatpush2.msra.mxu0 0.0
    %186 = vmatprep.subr.mxu0 0.0
    %187 = vmatpush2.msra.mxu0 0.0
    %188 = vmatprep.subr.mxu0 0.0
    %189 = vmatpush2.msra.mxu0 0.0
    %190 = vmatprep.subr.mxu0 0.0
    %191 = vmatpush2.msra.mxu0 0.0
    %192 = vmatprep.subr.mxu0 0.0
    %193 = vmatpush2.msra.mxu0 0.0
    %194 = vmatprep.subr.mxu0 0.0
    %195 = vmatpush2.msra.mxu0 0.0
    %196 = vmatprep.subr.mxu0 0.0
    %197 = vmatpush2.msra.mxu0 0.0
    %198 = vmatprep.subr.mxu0 0.0
    %199 = vmatpush2.msra.mxu0 0.0
    %200 = vmatprep.subr.mxu0 0.0
    %201 = vmatpush2.msra.mxu0 0.0
    %202 = vmatprep.subr.mxu0 0.0
    %203 = vmatpush2.msra.mxu0 0.0
    %204 = vmatprep.subr.mxu0 0.0
    %205 = vmatpush2.msra.mxu0 0.0
    %206 = vmatprep.mubr.f32.mxu0 0.0
    %207 = vmatmul.mubr.f32.gmra.mxu0 %v131
    %v208 = vpop.f32.mrf.mxu0
    %v209 = vadd.f32 0.0, %v208
    %v210 = vpop.f32.mrf.mxu0
    %v211 = vadd.f32 0.0, %v210
    %212 = vmatprep.mubr.f32.mxu0 0.0
    %213 = vmatmul.mubr.f32.gmra.mxu0 %v134
    %v214 = vpop.f32.mrf.mxu0
    %v215 = vadd.f32 0.0, %v214
    %v216 = vpop.f32.mrf.mxu0
    %v217 = vadd.f32 0.0, %v216
    %218 = vmatprep.mubr.f32.mxu0 0.0
    %219 = vmatmul.mubr.f32.gmra.mxu0 %v137
    %v220 = vpop.f32.mrf.mxu0
    %v221 = vadd.f32 0.0, %v220
    %v222 = vpop.f32.mrf.mxu0
    %v223 = vadd.f32 0.0, %v222
    %224 = vmatprep.mubr.f32.mxu0 0.0
    %225 = vmatmul.mubr.f32.gmra.mxu0 %v140
    %v226 = vpop.f32.mrf.mxu0
    %v227 = vadd.f32 0.0, %v226
    %v228 = vpop.f32.mrf.mxu0
    %v229 = vadd.f32 0.0, %v228
    %230 = vdwg.mxu0
    %231 = vmatprep.subr.mxu0 0.0
    %232 = vmatpush1.msra.mxu0 0.0
    %233 = vmatprep.subr.mxu0 0.0
    %234 = vmatpush1.msra.mxu0 0.0
    %235 = vmatprep.subr.mxu0 0.0
    %236 = vmatpush1.msra.mxu0 0.0
    %237 = vmatprep.subr.mxu0 0.0
    %238 = vmatpush1.msra.mxu0 0.0
    %239 = vmatprep.subr.mxu0 0.0
    %240 = vmatpush1.msra.mxu0 0.0
    %241 = vmatprep.subr.mxu0 0.0
    %242 = vmatpush1.msra.mxu0 0.0
    %243 = vmatprep.subr.mxu0 0.0
    %244 = vmatpush1.msra.mxu0 0.0
    %245 = vmatprep.subr.mxu0 0.0
    %246 = vmatpush1.msra.mxu0 0.0
    %247 = vmatprep.subr.mxu0 0.0
    %248 = vmatpush1.msra.mxu0 0.0
    %249 = vmatprep.subr.mxu0 0.0
    %250 = vmatpush1.msra.mxu0 0.0
    %251 = vmatprep.subr.mxu0 0.0
    %252 = vmatpush1.msra.mxu0 0.0
    %253 = vmatprep.subr.mxu0 0.0
    %254 = vmatpush1.msra.mxu0 0.0
    %255 = vmatprep.subr.mxu0 %v126
    %256 = vmatpush1.msra.mxu0 %v125
    %257 = vmatprep.subr.mxu0 %v120
    %258 = vmatpush1.msra.mxu0 %v119
    %259 = vmatprep.subr.mxu0 %v114
    %260 = vmatpush1.msra.mxu0 %v113
    %261 = vmatprep.subr.mxu0 %v108
    %262 = vmatpush1.msra.mxu0 %v107
    %263 = vmatprep.subr.mxu0 0.0
    %264 = vmatpush2.msra.mxu0 0.0
    %265 = vmatprep.subr.mxu0 0.0
    %266 = vmatpush2.msra.mxu0 0.0
    %267 = vmatprep.subr.mxu0 0.0
    %268 = vmatpush2.msra.mxu0 0.0
    %269 = vmatprep.subr.mxu0 0.0
    %270 = vmatpush2.msra.mxu0 0.0
    %271 = vmatprep.subr.mxu0 0.0
    %272 = vmatpush2.msra.mxu0 0.0
    %273 = vmatprep.subr.mxu0 0.0
    %274 = vmatpush2.msra.mxu0 0.0
    %275 = vmatprep.subr.mxu0 0.0
    %276 = vmatpush2.msra.mxu0 0.0
    %277 = vmatprep.subr.mxu0 0.0
    %278 = vmatpush2.msra.mxu0 0.0
    %279 = vmatprep.subr.mxu0 0.0
    %280 = vmatpush2.msra.mxu0 0.0
    %281 = vmatprep.subr.mxu0 0.0
    %282 = vmatpush2.msra.mxu0 0.0
    %283 = vmatprep.subr.mxu0 0.0
    %284 = vmatpush2.msra.mxu0 0.0
    %285 = vmatprep.subr.mxu0 0.0
    %286 = vmatpush2.msra.mxu0 0.0
    %287 = vmatprep.subr.mxu0 0.0
    %288 = vmatpush2.msra.mxu0 0.0
    %289 = vmatprep.subr.mxu0 0.0
    %290 = vmatpush2.msra.mxu0 0.0
    %291 = vmatprep.subr.mxu0 0.0
    %292 = vmatpush2.msra.mxu0 0.0
    %293 = vmatprep.subr.mxu0 0.0
    %294 = vmatpush2.msra.mxu0 0.0
    %295 = vmatprep.mubr.f32.mxu0 0.0
    %296 = vmatmul.mubr.f32.gmra.mxu0 %v131
    %v297 = vpop.f32.mrf.mxu0
    %v298 = vadd.f32 0.0, %v297
    %v299 = vpop.f32.mrf.mxu0
    %v300 = vadd.f32 0.0, %v299
    %301 = vmatprep.mubr.f32.mxu0 0.0
    %302 = vmatmul.mubr.f32.gmra.mxu0 %v134
    %v303 = vpop.f32.mrf.mxu0
    %v304 = vadd.f32 0.0, %v303
    %v305 = vpop.f32.mrf.mxu0
    %v306 = vadd.f32 0.0, %v305
    %307 = vmatprep.mubr.f32.mxu0 0.0
    %308 = vmatmul.mubr.f32.gmra.mxu0 %v137
    %v309 = vpop.f32.mrf.mxu0
    %v310 = vadd.f32 0.0, %v309
    %v311 = vpop.f32.mrf.mxu0
    %v312 = vadd.f32 0.0, %v311
    %313 = vmatprep.mubr.f32.mxu0 0.0
    %314 = vmatmul.mubr.f32.gmra.mxu0 %v140
    %v315 = vpop.f32.mrf.mxu0
    %v316 = vadd.f32 0.0, %v315
    %v317 = vpop.f32.mrf.mxu0
    %v318 = vadd.f32 0.0, %v317
    %319 = vdwg.mxu0
    %320 = vmatprep.subr.mxu0 0.0
    %321 = vmatpush1.msra.mxu0 0.0
    %322 = vmatprep.subr.mxu0 0.0
    %323 = vmatpush1.msra.mxu0 0.0
    %324 = vmatprep.subr.mxu0 0.0
    %325 = vmatpush1.msra.mxu0 0.0
    %326 = vmatprep.subr.mxu0 0.0
    %327 = vmatpush1.msra.mxu0 0.0
    %328 = vmatprep.subr.mxu0 0.0
    %329 = vmatpush1.msra.mxu0 0.0
    %330 = vmatprep.subr.mxu0 0.0
    %331 = vmatpush1.msra.mxu0 0.0
    %332 = vmatprep.subr.mxu0 0.0
    %333 = vmatpush1.msra.mxu0 0.0
    %334 = vmatprep.subr.mxu0 0.0
    %335 = vmatpush1.msra.mxu0 0.0
    %336 = vmatprep.subr.mxu0 0.0
    %337 = vmatpush1.msra.mxu0 0.0
    %338 = vmatprep.subr.mxu0 0.0
    %339 = vmatpush1.msra.mxu0 0.0
    %340 = vmatprep.subr.mxu0 0.0
    %341 = vmatpush1.msra.mxu0 0.0
    %342 = vmatprep.subr.mxu0 0.0
    %343 = vmatpush1.msra.mxu0 0.0
    %344 = vmatprep.subr.mxu0 %v128
    %345 = vmatpush1.msra.mxu0 %v127
    %346 = vmatprep.subr.mxu0 %v122
    %347 = vmatpush1.msra.mxu0 %v121
    %348 = vmatprep.subr.mxu0 %v116
    %349 = vmatpush1.msra.mxu0 %v115
    %350 = vmatprep.subr.mxu0 %v110
    %351 = vmatpush1.msra.mxu0 %v109
    %352 = vmatprep.subr.mxu0 0.0
    %353 = vmatpush2.msra.mxu0 0.0
    %354 = vmatprep.subr.mxu0 0.0
    %355 = vmatpush2.msra.mxu0 0.0
    %356 = vmatprep.subr.mxu0 0.0
    %357 = vmatpush2.msra.mxu0 0.0
    %358 = vmatprep.subr.mxu0 0.0
    %359 = vmatpush2.msra.mxu0 0.0
    %360 = vmatprep.subr.mxu0 0.0
    %361 = vmatpush2.msra.mxu0 0.0
    %362 = vmatprep.subr.mxu0 0.0
    %363 = vmatpush2.msra.mxu0 0.0
    %364 = vmatprep.subr.mxu0 0.0
    %365 = vmatpush2.msra.mxu0 0.0
    %366 = vmatprep.subr.mxu0 0.0
    %367 = vmatpush2.msra.mxu0 0.0
    %368 = vmatprep.subr.mxu0 0.0
    %369 = vmatpush2.msra.mxu0 0.0
    %370 = vmatprep.subr.mxu0 0.0
    %371 = vmatpush2.msra.mxu0 0.0
    %372 = vmatprep.subr.mxu0 0.0
    %373 = vmatpush2.msra.mxu0 0.0
    %374 = vmatprep.subr.mxu0 0.0
    %375 = vmatpush2.msra.mxu0 0.0
    %376 = vmatprep.subr.mxu0 0.0
    %377 = vmatpush2.msra.mxu0 0.0
    %378 = vmatprep.subr.mxu0 0.0
    %379 = vmatpush2.msra.mxu0 0.0
    %380 = vmatprep.subr.mxu0 0.0
    %381 = vmatpush2.msra.mxu0 0.0
    %382 = vmatprep.subr.mxu0 0.0
    %383 = vmatpush2.msra.mxu0 0.0
    %384 = vmatprep.mubr.f32.mxu0 0.0
    %385 = vmatmul.mubr.f32.gmra.mxu0 %v131
    %v386 = vpop.f32.mrf.mxu0
    %v387 = vadd.f32 0.0, %v386
    %v388 = vpop.f32.mrf.mxu0
    %v389 = vadd.f32 0.0, %v388
    %390 = vmatprep.mubr.f32.mxu0 0.0
    %391 = vmatmul.mubr.f32.gmra.mxu0 %v134
    %v392 = vpop.f32.mrf.mxu0
    %v393 = vadd.f32 0.0, %v392
    %v394 = vpop.f32.mrf.mxu0
    %v395 = vadd.f32 0.0, %v394
    %396 = vmatprep.mubr.f32.mxu0 0.0
    %397 = vmatmul.mubr.f32.gmra.mxu0 %v137
    %v398 = vpop.f32.mrf.mxu0
    %v399 = vadd.f32 0.0, %v398
    %v400 = vpop.f32.mrf.mxu0
    %v401 = vadd.f32 0.0, %v400
    %402 = vmatprep.mubr.f32.mxu0 0.0
    %403 = vmatmul.mubr.f32.gmra.mxu0 %v140
    %v404 = vpop.f32.mrf.mxu0
    %v405 = vadd.f32 0.0, %v404
    %v406 = vpop.f32.mrf.mxu0
    %v407 = vadd.f32 0.0, %v406
    %408 = vdwg.mxu0
    %vm413 = vcmask 1046528
    %v414 = vrot.slane %v209, 1
    %v415 = vrot.slane %v215, 1
    %v416 = vsel %vm413, %v414, %v415
    %v417 = vrot.slane %v221, 1
    %v418 = vrot.slane %v227, 1
    %v419 = vsel %vm413, %v417, %v418
    %420 = vrot.lane.b32.xlu0 %v416, 64
    %v421 = vpop.permute.xlu0 %420
    %422 = vrot.lane.b32.xlu0 %v415, 64
    %v423 = vpop.permute.xlu0 %422
    %424 = vrot.lane.b32.xlu0 %v419, 64
    %v425 = vpop.permute.xlu0 %424
    %426 = vrot.lane.b32.xlu0 %v418, 64
    %v427 = vpop.permute.xlu0 %426
    %v432 = vadd.f32 %v209, %v421
    %v433 = vadd.f32 %v215, %v423
    %v434 = vadd.f32 %v221, %v425
    %v435 = vadd.f32 %v227, %v427
    %vm440 = vcmask 1045504
    %v441 = vrot.slane %v211, 2
    %v442 = vrot.slane %v217, 2
    %v443 = vsel %vm440, %v441, %v442
    %v444 = vrot.slane %v223, 2
    %v445 = vrot.slane %v229, 2
    %v446 = vsel %vm440, %v444, %v445
    %v451 = vadd.f32 %v432, %v443
    %v452 = vadd.f32 %v433, %v442
    %v453 = vadd.f32 %v434, %v446
    %v454 = vadd.f32 %v435, %v445
    %vm455 = vcmask 523264
    %v456 = vsel %vm455, %v451, -inf
    %vm457 = vcmask 521216
    %v458 = vsel %vm457, %v452, -inf
    %v459 = vmax.f32 %v456, %v458
    %v460 = vrot.slane %v459, 4
    %v461 = vmax.f32 %v459, %v460
    %v462 = vrot.slane %v461, 2
    %v463 = vmax.f32 %v461, %v462
    %v464 = vrot.slane %v463, 1
    %v465 = vmax.f32 %v463, %v464
    %v466 = vsel %vm455, %v453, -inf
    %v467 = vsel %vm457, %v454, -inf
    %v468 = vmax.f32 %v466, %v467
    %v469 = vrot.slane %v468, 4
    %v470 = vmax.f32 %v468, %v469
    %v471 = vrot.slane %v470, 2
    %v472 = vmax.f32 %v470, %v471
    %v473 = vrot.slane %v472, 1
    %v474 = vmax.f32 %v472, %v473
    %v475 = vld [vmem:[%s2] sm:$0x1]
    %v477 = vlaneseq
    %v478 = vshrl.u32 %v477, 7
    %v479 = vsub.s32 0, %v478
    %v480 = vrot.slane %v475, %v479
    %v482 = vadd.f32 %v465, %v480
    %v483 = vadd.f32 %v474, %v480
    %v484 = vmax.f32 %v482, 0.0
    %v485 = vmax.f32 %v483, 0.0
    %v490 = vrot.slane %v298, 1
    %v491 = vrot.slane %v304, 1
    %v492 = vsel %vm413, %v490, %v491
    %v493 = vrot.slane %v310, 1
    %v494 = vrot.slane %v316, 1
    %v495 = vsel %vm413, %v493, %v494
    %496 = vrot.lane.b32.xlu0 %v492, 64
    %v497 = vpop.permute.xlu0 %496
    %498 = vrot.lane.b32.xlu0 %v491, 64
    %v499 = vpop.permute.xlu0 %498
    %500 = vrot.lane.b32.xlu0 %v495, 64
    %v501 = vpop.permute.xlu0 %500
    %502 = vrot.lane.b32.xlu0 %v494, 64
    %v503 = vpop.permute.xlu0 %502
    %v508 = vadd.f32 %v211, %v497
    %v509 = vadd.f32 %v217, %v499
    %v510 = vadd.f32 %v223, %v501
    %v511 = vadd.f32 %v229, %v503
    %v512 = vrot.slane %v298, 2
    %v513 = vrot.slane %v304, 2
    %v514 = vsel %vm440, %v512, %v513
    %v515 = vrot.slane %v310, 2
    %v516 = vrot.slane %v316, 2
    %v517 = vsel %vm440, %v515, %v516
    %v522 = vadd.f32 %v508, %v514
    %v523 = vadd.f32 %v509, %v513
    %v524 = vadd.f32 %v510, %v517
    %v525 = vadd.f32 %v511, %v516
    %vm530 = vcmask 1044480
    %v531 = vrot.slane %v300, 3
    %v532 = vrot.slane %v306, 3
    %v533 = vsel %vm530, %v531, %v532
    %v534 = vrot.slane %v312, 3
    %v535 = vrot.slane %v318, 3
    %v536 = vsel %vm530, %v534, %v535
    %537 = vrot.lane.b32.xlu0 %v533, 64
    %v538 = vpop.permute.xlu0 %537
    %539 = vrot.lane.b32.xlu0 %v532, 64
    %v540 = vpop.permute.xlu0 %539
    %541 = vrot.lane.b32.xlu0 %v536, 64
    %v542 = vpop.permute.xlu0 %541
    %543 = vrot.lane.b32.xlu0 %v535, 64
    %v544 = vpop.permute.xlu0 %543
    %v549 = vadd.f32 %v522, %v538
    %v550 = vadd.f32 %v523, %v540
    %v551 = vadd.f32 %v524, %v542
    %v552 = vadd.f32 %v525, %v544
    %vm553 = vcmask 1048064
    %v554 = vsel %vm553, %v549, -inf
    %vm555 = vcmask 1044992
    %v556 = vsel %vm555, %v550, -inf
    %v557 = vmax.f32 %v554, %v556
    %v558 = vrot.slane %v557, 4
    %v559 = vmax.f32 %v557, %v558
    %v560 = vrot.slane %v559, 2
    %v561 = vmax.f32 %v559, %v560
    %v562 = vrot.slane %v561, 1
    %v563 = vmax.f32 %v561, %v562
    %v564 = vsel %vm553, %v551, -inf
    %v565 = vsel %vm555, %v552, -inf
    %v566 = vmax.f32 %v564, %v565
    %v567 = vrot.slane %v566, 4
    %v568 = vmax.f32 %v566, %v567
    %v569 = vrot.slane %v568, 2
    %v570 = vmax.f32 %v568, %v569
    %v571 = vrot.slane %v570, 1
    %v572 = vmax.f32 %v570, %v571
    %v573 = vld [vmem:[%s3] sm:$0x1]
    %v575 = vlaneseq
    %v576 = vshrl.u32 %v575, 7
    %v577 = vsub.s32 0, %v576
    %v578 = vrot.slane %v573, %v577
    %579 = vrot.lane.b32.xlu0 %v578, 64
    %v580 = vpop.permute.xlu0 %579
    %v582 = vadd.f32 %v563, %v580
    %v583 = vadd.f32 %v572, %v580
    %v584 = vmax.f32 %v582, 0.0
    %v585 = vmax.f32 %v583, 0.0
    %v590 = vrot.slane %v387, 1
    %v591 = vrot.slane %v393, 1
    %v592 = vsel %vm413, %v590, %v591
    %v593 = vrot.slane %v399, 1
    %v594 = vrot.slane %v405, 1
    %v595 = vsel %vm413, %v593, %v594
    %596 = vrot.lane.b32.xlu0 %v592, 64
    %v597 = vpop.permute.xlu0 %596
    %598 = vrot.lane.b32.xlu0 %v591, 64
    %v599 = vpop.permute.xlu0 %598
    %600 = vrot.lane.b32.xlu0 %v595, 64
    %v601 = vpop.permute.xlu0 %600
    %602 = vrot.lane.b32.xlu0 %v594, 64
    %v603 = vpop.permute.xlu0 %602
    %v608 = vadd.f32 %v300, %v597
    %v609 = vadd.f32 %v306, %v599
    %v610 = vadd.f32 %v312, %v601
    %v611 = vadd.f32 %v318, %v603
    %v612 = vrot.slane %v387, 2
    %v613 = vrot.slane %v393, 2
    %v614 = vsel %vm440, %v612, %v613
    %v615 = vrot.slane %v399, 2
    %v616 = vrot.slane %v405, 2
    %v617 = vsel %vm440, %v615, %v616
    %v622 = vadd.f32 %v608, %v614
    %v623 = vadd.f32 %v609, %v613
    %v624 = vadd.f32 %v610, %v617
    %v625 = vadd.f32 %v611, %v616
    %v630 = vrot.slane %v389, 3
    %v631 = vrot.slane %v395, 3
    %v632 = vsel %vm530, %v630, %v631
    %v633 = vrot.slane %v401, 3
    %v634 = vrot.slane %v407, 3
    %v635 = vsel %vm530, %v633, %v634
    %636 = vrot.lane.b32.xlu0 %v632, 64
    %v637 = vpop.permute.xlu0 %636
    %638 = vrot.lane.b32.xlu0 %v631, 64
    %v639 = vpop.permute.xlu0 %638
    %640 = vrot.lane.b32.xlu0 %v635, 64
    %v641 = vpop.permute.xlu0 %640
    %642 = vrot.lane.b32.xlu0 %v634, 64
    %v643 = vpop.permute.xlu0 %642
    %v648 = vadd.f32 %v622, %v637
    %v649 = vadd.f32 %v623, %v639
    %v650 = vadd.f32 %v624, %v641
    %v651 = vadd.f32 %v625, %v643
    %vm652 = vcmask 1043456
    %v653 = vrot.slane %v389, 4
    %v654 = vrot.slane %v395, 4
    %v655 = vsel %vm652, %v653, %v654
    %v656 = vrot.slane %v401, 4
    %v657 = vrot.slane %v407, 4
    %v658 = vsel %vm652, %v656, %v657
    %v663 = vadd.f32 %v648, %v655
    %v664 = vadd.f32 %v649, %v654
    %v665 = vadd.f32 %v650, %v658
    %v666 = vadd.f32 %v651, %v657
    %v667 = vsel %vm553, %v663, -inf
    %vm668 = vcmask 1043968
    %v669 = vsel %vm668, %v664, -inf
    %v670 = vmax.f32 %v667, %v669
    %v671 = vrot.slane %v670, 4
    %v672 = vmax.f32 %v670, %v671
    %v673 = vrot.slane %v672, 2
    %v674 = vmax.f32 %v672, %v673
    %v675 = vrot.slane %v674, 1
    %v676 = vmax.f32 %v674, %v675
    %v677 = vsel %vm553, %v665, -inf
    %v678 = vsel %vm668, %v666, -inf
    %v679 = vmax.f32 %v677, %v678
    %v680 = vrot.slane %v679, 4
    %v681 = vmax.f32 %v679, %v680
    %v682 = vrot.slane %v681, 2
    %v683 = vmax.f32 %v681, %v682
    %v684 = vrot.slane %v683, 1
    %v685 = vmax.f32 %v683, %v684
    %v686 = vld [vmem:[%s4] sm:$0x1]
    %v688 = vlaneseq
    %v689 = vshrl.u32 %v688, 7
    %v690 = vsub.s32 0, %v689
    %v691 = vrot.slane %v686, %v690
    %692 = vrot.lane.b32.xlu0 %v691, 64
    %v693 = vpop.permute.xlu0 %692
    %v695 = vadd.f32 %v676, %v693
    %v696 = vadd.f32 %v685, %v693
    %v697 = vmax.f32 %v695, 0.0
    %v698 = vmax.f32 %v696, 0.0
    %v699 = vld [vmem:[#allocation7] sm:$0xff]
    %v700 = vld [vmem:[#allocation7 + $0x8] sm:$0xff]
    %v701 = vld [vmem:[#allocation7 + $0x10] sm:$0xff]
    %v702 = vld [vmem:[#allocation7 + $0x18] sm:$0xff]
    %v703 = vld [vmem:[#allocation7 + $0x20] sm:$0xff]
    %v704 = vld [vmem:[#allocation7 + $0x28] sm:$0xff]
    %v705 = vld [vmem:[#allocation7 + $0x30] sm:$0xff]
    %v706 = vld [vmem:[#allocation7 + $0x38] sm:$0xff]
    %v707 = vld [vmem:[#allocation8] sm:$0xff]
    %v708 = vld [vmem:[#allocation8 + $0x8] sm:$0xff]
    %v709 = vld [vmem:[#allocation8 + $0x10] sm:$0xff]
    %v710 = vld [vmem:[#allocation8 + $0x18] sm:$0xff]
    %v711 = vld [vmem:[#allocation8 + $0x20] sm:$0xff]
    %v712 = vld [vmem:[#allocation8 + $0x28] sm:$0xff]
    %v713 = vld [vmem:[#allocation8 + $0x30] sm:$0xff]
    %v714 = vld [vmem:[#allocation8 + $0x38] sm:$0xff]
    %v717 = vrot.slane %v585, 7
    %vm718 = vcmask 1041409
    %v719 = vsel %vm718, %v717, %v584
    %720 = vrot.lane.b32.xlu0 %v719, 64
    %v721 = vpop.permute.xlu0 %720
    %v722 = vsel %vm455, %v721, 0
    %724 = vmatprep.subr.mxu0 0.0
    %725 = vmatpush1.msra.mxu0 0.0
    %726 = vmatprep.subr.mxu0 0.0
    %727 = vmatpush1.msra.mxu0 0.0
    %728 = vmatprep.subr.mxu0 0.0
    %729 = vmatpush1.msra.mxu0 0.0
    %730 = vmatprep.subr.mxu0 0.0
    %731 = vmatpush1.msra.mxu0 0.0
    %732 = vmatprep.subr.mxu0 0.0
    %733 = vmatpush1.msra.mxu0 0.0
    %734 = vmatprep.subr.mxu0 0.0
    %735 = vmatpush1.msra.mxu0 0.0
    %736 = vmatprep.subr.mxu0 0.0
    %737 = vmatpush1.msra.mxu0 0.0
    %738 = vmatprep.subr.mxu0 0.0
    %739 = vmatpush1.msra.mxu0 0.0
    %740 = vmatprep.subr.mxu0 0.0
    %741 = vmatpush1.msra.mxu0 %v714
    %742 = vmatprep.subr.mxu0 0.0
    %743 = vmatpush1.msra.mxu0 %v713
    %744 = vmatprep.subr.mxu0 0.0
    %745 = vmatpush1.msra.mxu0 %v712
    %746 = vmatprep.subr.mxu0 0.0
    %747 = vmatpush1.msra.mxu0 %v711
    %748 = vmatprep.subr.mxu0 0.0
    %749 = vmatpush1.msra.mxu0 %v710
    %750 = vmatprep.subr.mxu0 0.0
    %751 = vmatpush1.msra.mxu0 %v709
    %752 = vmatprep.subr.mxu0 0.0
    %753 = vmatpush1.msra.mxu0 %v708
    %754 = vmatprep.subr.mxu0 0.0
    %755 = vmatpush1.msra.mxu0 %v707
    %756 = vmatprep.subr.mxu0 0.0
    %757 = vmatpush2.msra.mxu0 0.0
    %758 = vmatprep.subr.mxu0 0.0
    %759 = vmatpush2.msra.mxu0 0.0
    %760 = vmatprep.subr.mxu0 0.0
    %761 = vmatpush2.msra.mxu0 0.0
    %762 = vmatprep.subr.mxu0 0.0
    %763 = vmatpush2.msra.mxu0 0.0
    %764 = vmatprep.subr.mxu0 0.0
    %765 = vmatpush2.msra.mxu0 0.0
    %766 = vmatprep.subr.mxu0 0.0
    %767 = vmatpush2.msra.mxu0 0.0
    %768 = vmatprep.subr.mxu0 0.0
    %769 = vmatpush2.msra.mxu0 0.0
    %770 = vmatprep.subr.mxu0 0.0
    %771 = vmatpush2.msra.mxu0 0.0
    %772 = vmatprep.subr.mxu0 0.0
    %773 = vmatpush2.msra.mxu0 0.0
    %774 = vmatprep.subr.mxu0 0.0
    %775 = vmatpush2.msra.mxu0 0.0
    %776 = vmatprep.subr.mxu0 0.0
    %777 = vmatpush2.msra.mxu0 0.0
    %778 = vmatprep.subr.mxu0 0.0
    %779 = vmatpush2.msra.mxu0 0.0
    %780 = vmatprep.subr.mxu0 0.0
    %781 = vmatpush2.msra.mxu0 0.0
    %782 = vmatprep.subr.mxu0 0.0
    %783 = vmatpush2.msra.mxu0 0.0
    %784 = vmatprep.subr.mxu0 0.0
    %785 = vmatpush2.msra.mxu0 0.0
    %786 = vmatprep.subr.mxu0 0.0
    %787 = vmatpush2.msra.mxu0 0.0
    %788 = vmatprep.mubr.f32.mxu0 0.0
    %789 = vmatmul.mubr.f32.gmra.mxu0 %v722
    %v790 = vpop.f32.mrf.mxu0
    %v791 = vadd.f32 0.0, %v790
    %v792 = vpop.f32.mrf.mxu0
    %793 = vdwg.mxu0
    %v796 = vrot.slane %v485, 7
    %v797 = vsel %vm718, %v796, %v484
    %v798 = vsel %vm455, %v797, 0
    %800 = vmatprep.subr.mxu0 0.0
    %801 = vmatpush1.msra.mxu0 0.0
    %802 = vmatprep.subr.mxu0 0.0
    %803 = vmatpush1.msra.mxu0 0.0
    %804 = vmatprep.subr.mxu0 0.0
    %805 = vmatpush1.msra.mxu0 0.0
    %806 = vmatprep.subr.mxu0 0.0
    %807 = vmatpush1.msra.mxu0 0.0
    %808 = vmatprep.subr.mxu0 0.0
    %809 = vmatpush1.msra.mxu0 0.0
    %810 = vmatprep.subr.mxu0 0.0
    %811 = vmatpush1.msra.mxu0 0.0
    %812 = vmatprep.subr.mxu0 0.0
    %813 = vmatpush1.msra.mxu0 0.0
    %814 = vmatprep.subr.mxu0 0.0
    %815 = vmatpush1.msra.mxu0 0.0
    %816 = vmatprep.subr.mxu0 0.0
    %817 = vmatpush1.msra.mxu0 %v706
    %818 = vmatprep.subr.mxu0 0.0
    %819 = vmatpush1.msra.mxu0 %v705
    %820 = vmatprep.subr.mxu0 0.0
    %821 = vmatpush1.msra.mxu0 %v704
    %822 = vmatprep.subr.mxu0 0.0
    %823 = vmatpush1.msra.mxu0 %v703
    %824 = vmatprep.subr.mxu0 0.0
    %825 = vmatpush1.msra.mxu0 %v702
    %826 = vmatprep.subr.mxu0 0.0
    %827 = vmatpush1.msra.mxu0 %v701
    %828 = vmatprep.subr.mxu0 0.0
    %829 = vmatpush1.msra.mxu0 %v700
    %830 = vmatprep.subr.mxu0 0.0
    %831 = vmatpush1.msra.mxu0 %v699
    %832 = vmatprep.subr.mxu0 0.0
    %833 = vmatpush2.msra.mxu0 0.0
    %834 = vmatprep.subr.mxu0 0.0
    %835 = vmatpush2.msra.mxu0 0.0
    %836 = vmatprep.subr.mxu0 0.0
    %837 = vmatpush2.msra.mxu0 0.0
    %838 = vmatprep.subr.mxu0 0.0
    %839 = vmatpush2.msra.mxu0 0.0
    %840 = vmatprep.subr.mxu0 0.0
    %841 = vmatpush2.msra.mxu0 0.0
    %842 = vmatprep.subr.mxu0 0.0
    %843 = vmatpush2.msra.mxu0 0.0
    %844 = vmatprep.subr.mxu0 0.0
    %845 = vmatpush2.msra.mxu0 0.0
    %846 = vmatprep.subr.mxu0 0.0
    %847 = vmatpush2.msra.mxu0 0.0
    %848 = vmatprep.subr.mxu0 0.0
    %849 = vmatpush2.msra.mxu0 0.0
    %850 = vmatprep.subr.mxu0 0.0
    %851 = vmatpush2.msra.mxu0 0.0
    %852 = vmatprep.subr.mxu0 0.0
    %853 = vmatpush2.msra.mxu0 0.0
    %854 = vmatprep.subr.mxu0 0.0
    %855 = vmatpush2.msra.mxu0 0.0
    %856 = vmatprep.subr.mxu0 0.0
    %857 = vmatpush2.msra.mxu0 0.0
    %858 = vmatprep.subr.mxu0 0.0
    %859 = vmatpush2.msra.mxu0 0.0
    %860 = vmatprep.subr.mxu0 0.0
    %861 = vmatpush2.msra.mxu0 0.0
    %862 = vmatprep.subr.mxu0 0.0
    %863 = vmatpush2.msra.mxu0 0.0
    %864 = vmatprep.mubr.f32.mxu0 0.0
    %865 = vmatmul.mubr.f32.gmra.mxu0 %v798
    %v866 = vpop.f32.mrf.mxu0
    %v867 = vadd.f32 %v791, %v866
    %v868 = vpop.f32.mrf.mxu0
    %869 = vdwg.mxu0
    %v870 = vld [vmem:[#allocation10] sm:$0xff]
    %v871 = vld [vmem:[#allocation10 + $0x8] sm:$0xff]
    %v872 = vld [vmem:[#allocation10 + $0x10] sm:$0xff]
    %v873 = vld [vmem:[#allocation10 + $0x18] sm:$0xff]
    %v874 = vld [vmem:[#allocation10 + $0x20] sm:$0xff]
    %v875 = vld [vmem:[#allocation10 + $0x28] sm:$0xff]
    %v876 = vld [vmem:[#allocation10 + $0x30] sm:$0xff]
    %v877 = vld [vmem:[#allocation10 + $0x38] sm:$0xff]
    %v880 = vrot.slane %v698, 7
    %v881 = vsel %vm718, %v880, %v697
    %882 = vrot.lane.b32.xlu0 %v881, 64
    %v883 = vpop.permute.xlu0 %882
    %v884 = vsel %vm455, %v883, 0
    %886 = vmatprep.subr.mxu0 0.0
    %887 = vmatpush1.msra.mxu0 0.0
    %888 = vmatprep.subr.mxu0 0.0
    %889 = vmatpush1.msra.mxu0 0.0
    %890 = vmatprep.subr.mxu0 0.0
    %891 = vmatpush1.msra.mxu0 0.0
    %892 = vmatprep.subr.mxu0 0.0
    %893 = vmatpush1.msra.mxu0 0.0
    %894 = vmatprep.subr.mxu0 0.0
    %895 = vmatpush1.msra.mxu0 0.0
    %896 = vmatprep.subr.mxu0 0.0
    %897 = vmatpush1.msra.mxu0 0.0
    %898 = vmatprep.subr.mxu0 0.0
    %899 = vmatpush1.msra.mxu0 0.0
    %900 = vmatprep.subr.mxu0 0.0
    %901 = vmatpush1.msra.mxu0 0.0
    %902 = vmatprep.subr.mxu0 0.0
    %903 = vmatpush1.msra.mxu0 %v877
    %904 = vmatprep.subr.mxu0 0.0
    %905 = vmatpush1.msra.mxu0 %v876
    %906 = vmatprep.subr.mxu0 0.0
    %907 = vmatpush1.msra.mxu0 %v875
    %908 = vmatprep.subr.mxu0 0.0
    %909 = vmatpush1.msra.mxu0 %v874
    %910 = vmatprep.subr.mxu0 0.0
    %911 = vmatpush1.msra.mxu0 %v873
    %912 = vmatprep.subr.mxu0 0.0
    %913 = vmatpush1.msra.mxu0 %v872
    %914 = vmatprep.subr.mxu0 0.0
    %915 = vmatpush1.msra.mxu0 %v871
    %916 = vmatprep.subr.mxu0 0.0
    %917 = vmatpush1.msra.mxu0 %v870
    %918 = vmatprep.subr.mxu0 0.0
    %919 = vmatpush2.msra.mxu0 0.0
    %920 = vmatprep.subr.mxu0 0.0
    %921 = vmatpush2.msra.mxu0 0.0
    %922 = vmatprep.subr.mxu0 0.0
    %923 = vmatpush2.msra.mxu0 0.0
    %924 = vmatprep.subr.mxu0 0.0
    %925 = vmatpush2.msra.mxu0 0.0
    %926 = vmatprep.subr.mxu0 0.0
    %927 = vmatpush2.msra.mxu0 0.0
    %928 = vmatprep.subr.mxu0 0.0
    %929 = vmatpush2.msra.mxu0 0.0
    %930 = vmatprep.subr.mxu0 0.0
    %931 = vmatpush2.msra.mxu0 0.0
    %932 = vmatprep.subr.mxu0 0.0
    %933 = vmatpush2.msra.mxu0 0.0
    %934 = vmatprep.subr.mxu0 0.0
    %935 = vmatpush2.msra.mxu0 0.0
    %936 = vmatprep.subr.mxu0 0.0
    %937 = vmatpush2.msra.mxu0 0.0
    %938 = vmatprep.subr.mxu0 0.0
    %939 = vmatpush2.msra.mxu0 0.0
    %940 = vmatprep.subr.mxu0 0.0
    %941 = vmatpush2.msra.mxu0 0.0
    %942 = vmatprep.subr.mxu0 0.0
    %943 = vmatpush2.msra.mxu0 0.0
    %944 = vmatprep.subr.mxu0 0.0
    %945 = vmatpush2.msra.mxu0 0.0
    %946 = vmatprep.subr.mxu0 0.0
    %947 = vmatpush2.msra.mxu0 0.0
    %948 = vmatprep.subr.mxu0 0.0
    %949 = vmatpush2.msra.mxu0 0.0
    %950 = vmatprep.mubr.f32.mxu0 0.0
    %951 = vmatmul.mubr.f32.gmra.mxu0 %v884
    %v952 = vpop.f32.mrf.mxu0
    %v953 = vadd.f32 0.0, %v952
    %v954 = vpop.f32.mrf.mxu0
    %955 = vdwg.mxu0
    %v956 = vadd.f32 %v867, %v953
    %v957 = vld [vmem:[%s8] sm:$0x1]
    %v959 = vlaneseq
    %v960 = vshrl.u32 %v959, 7
    %v961 = vsub.s32 0, %v960
    %v962 = vrot.slane %v957, %v961
    %v964 = vadd.f32 %v956, %v962
    %v965 = vmax.f32 %v964, 0.0
    %vm966 = vcmask 517120
    %967 = vst.msk [vmem:[#allocation11] sm:$0x3] %vm966, %v965
    // Predicated region
    $region58: #{tpu_custom_call.1} parent=1 // pred_check
      _
    $region59: #{tpu_custom_call.1} parent=1 // pred_check_branch
      %969 = sbr.rel (0) target = $region61
    $region60: #{tpu_custom_call.1} parent=1 // pred_region
      %s971 = ssub.s32 32, 32
      %972 = vsyncadd [#allocation4], %s971
      %s974 = sshll.u32 [#allocation11], 4
      %s975 = int_to_ptr.vmem [resolvable:$true] %s974
      %977 = dma.vmem_to_hbm [thread:$0]  %s975, 32, %s9, [#allocation4]
    $region61: #{tpu_custom_call.1} parent=1 // pred_fallthru
      _
    // Predicated region
    $region62: #{tpu_custom_call.1} parent=1 // pred_check
      _
    $region63: #{tpu_custom_call.1} parent=1 // pred_check_branch
      %979 = sbr.rel (0) target = $region65
    $region64: #{tpu_custom_call.1} parent=1 // pred_region
      %980 = dma.done [#allocation4], 32
    $region65: #{tpu_custom_call.1} parent=1 // pred_fallthru
      _
    %981 = vsyncpa [#allocation3], 1
    %982 = vsyncpa [#allocation6], 1
    %983 = vsyncpa [#allocation9], 1
    %984 = vsyncpa [#allocation4], 1

</llo_original>
